<compile_context>
chip_gen: v5e
topology: v5e:2x2
jax: 0.10.0
libtpu: 0.0.40
codegen_flags: <defaults>
</compile_context>

<pallas_src>
import jax
import jax.numpy as jnp
from jax.experimental import pallas as pl
from jax.experimental.pallas import tpu as pltpu

_SMALL = 1e-6
_BETA = 2.0
_SUBLANE = 8
_VMEM_LIMIT = 32 * 1024 * 1024          # conservative: fits v7x's 64 MiB VMEM
_VMEM_TILE_BUDGET = 16 * 1024 * 1024    # pipeline buffers; leaves headroom for temps


def _round_up(x, m):
    return ((x + m - 1) // m) * m


def _round_down(x, m):
    return (x // m) * m


def _pick_tile_rows(batch, bytes_per_row, max_tile_rows):
    """Row-tile: multiple of 8 (or == batch), VMEM-aware, >=2 tiles if possible."""
    if batch <= _SUBLANE:
        return batch                     # full-extent row block (handles batch % 8 != 0)
    cap = max(_SUBLANE,
              _round_down(_VMEM_TILE_BUDGET // (2 * bytes_per_row), _SUBLANE))
    t = min(max_tile_rows, cap, _round_down(batch, _SUBLANE))
    # Keep at least 2 grid steps so the 'parallel' axis shards across v7x's
    # two TensorCores and DMA/compute pipelining actually overlaps.
    half = min(_round_up(-(-batch // 2), _SUBLANE), _round_down(batch, _SUBLANE))
    t = min(t, max(_SUBLANE, half))
    return max(_SUBLANE, _round_down(t, _SUBLANE))


def _fbeta_rows_kernel(logits_ref, labels_ref, fs_ref):
    """Per-row F_beta score for one batch-row tile."""
    x = logits_ref[...].astype(jnp.float32)       # (T, C)
    y = labels_ref[...].astype(jnp.float32)       # (T, C)
    p = jax.nn.sigmoid(x)
    num_pos = jnp.sum(p, axis=1, keepdims=True) + _SMALL       # (T, 1)
    num_pos_hat = jnp.sum(y, axis=1, keepdims=True) + _SMALL   # (T, 1)
    tp = jnp.sum(y * p, axis=1, keepdims=True)                 # (T, 1)
    precise = tp / num_pos
    recall = tp / num_pos_hat
    beta2 = _BETA * _BETA
    fs_ref[...] = ((1.0 + beta2) * precise * recall
                   / (beta2 * precise + recall + _SMALL))


def _combine_bce_kernel(half_beta_ref, logits_ref, labels_ref, out_ref):
    """out = 0.5*loss_beta + 0.5*BCEWithLogits(x, y) for one batch-row tile."""
    x = logits_ref[...].astype(jnp.float32)
    y = labels_ref[...].astype(jnp.float32)
    # Numerically stable BCE-with-logits: max(x,0) - x*y + log(1 + exp(-|x|)).
    # exp + log = 2 EUP ops/element (a sigmoid-based form costs 3).
    log_term = jnp.log(1.0 + jnp.exp(-jnp.abs(x)))
    bce = jnp.maximum(x, 0.0) - x * y + log_term
    out_ref[...] = (half_beta_ref[0] + 0.5 * bce).astype(out_ref.dtype)


def combine_loss(logits, labels, *, max_tile_rows=2048, out_dtype=None):
    """Pallas implementation of CombineLoss.forward(logits, labels)."""
    B, C = logits.shape
    assert labels.shape == (B, C)
    out_dtype = jnp.dtype(out_dtype) if out_dtype is not None else jnp.dtype(logits.dtype)

    lgt_bytes = jnp.dtype(logits.dtype).itemsize
    lbl_bytes = jnp.dtype(labels.dtype).itemsize
    out_bytes = out_dtype.itemsize

    params = pltpu.CompilerParams(dimension_semantics=("parallel",),
                                  vmem_limit_bytes=_VMEM_LIMIT)

    # ---- pass 1: per-row fs (2 big input streams, tiny output) ----
    t1 = _pick_tile_rows(B, C * (lgt_bytes + lbl_bytes), max_tile_rows)
    row1 = pl.BlockSpec((t1, C), lambda i: (i, 0))
    fs_rows = pl.pallas_call(
        _fbeta_rows_kernel,
        out_shape=jax.ShapeDtypeStruct((B, 1), jnp.float32),
        grid=(pl.cdiv(B, t1),),
        in_specs=[row1, row1],
        out_specs=pl.BlockSpec((t1, 1), lambda i: (i, 0)),
        compiler_params=params,
        cost_estimate=pl.CostEstimate(
            flops=8 * B * C, transcendentals=2 * B * C,
            bytes_accessed=B * C * (lgt_bytes + lbl_bytes) + B * 4),
    )(logits, labels)

    # Global fbeta reduction (tiny) stays in the wrapper so both passes are
    # fully 'parallel' with no serial accumulator carry.
    loss_beta = 1.0 - jnp.sum(fs_rows) / B
    half_beta = jnp.reshape(0.5 * loss_beta, (1,)).astype(jnp.float32)

    # ---- pass 2: elementwise BCE + broadcast of the scalar fbeta term ----
    t2 = _pick_tile_rows(B, C * (lgt_bytes + lbl_bytes + out_bytes), max_tile_rows)
    row2 = pl.BlockSpec((t2, C), lambda i: (i, 0))
    out = pl.pallas_call(
        _combine_bce_kernel,
        out_shape=jax.ShapeDtypeStruct((B, C), out_dtype),
        grid=(pl.cdiv(B, t2),),
        in_specs=[pl.BlockSpec(memory_space=pltpu.MemorySpace.SMEM),
                  row2, row2],
        out_specs=row2,
        compiler_params=params,
        cost_estimate=pl.CostEstimate(
            flops=6 * B * C, transcendentals=2 * B * C,
            bytes_accessed=B * C * (lgt_bytes + lbl_bytes + out_bytes)),
    )(half_beta, logits, labels)
    return out


def _reference(logits, labels):
    """Pure-JAX reference mirroring the PyTorch module semantics."""
    x = logits.astype(jnp.float32)
    y = labels.astype(jnp.float32)
    p = jax.nn.sigmoid(x)
    num_pos = jnp.sum(p, axis=1) + _SMALL
    num_pos_hat = jnp.sum(y, axis=1) + _SMALL
    tp = jnp.sum(y * p, axis=1)
    precise = tp / num_pos
    recall = tp / num_pos_hat
    beta2 = _BETA * _BETA
    fs = (1.0 + beta2) * precise * recall / (beta2 * precise + recall + _SMALL)
    loss_beta = 1.0 - jnp.sum(fs) / x.shape[0]
    bce = jnp.maximum(x, 0.0) - x * y + jnp.log1p(jnp.exp(-jnp.abs(x)))
    return 0.5 * loss_beta + 0.5 * bce


if __name__ == "__main__":
    key = jax.random.PRNGKey(0)
    k1, k2, k3, k4 = jax.random.split(key, 4)

    # small shapes consistent with the module: batch=4, num_classes=32
    B, C = 4, 32
    logits = jax.random.normal(k1, (B, C), dtype=jnp.float32)
    labels = (jax.random.uniform(k2, (B, C)) > 0.7).astype(jnp.float32)
    out = jax.block_until_ready(combine_loss(logits, labels))
    ref = _reference(logits, labels)
    assert out.shape == (B, C)
    assert jnp.allclose(out, ref, atol=1e-5, rtol=1e-5), "mismatch vs reference"

    # non-8/128-aligned shape: exercises full-extent class blocks + partial row tiles
    B2, C2 = 100, 200
    logits2 = jax.random.normal(k3, (B2, C2), dtype=jnp.float32)
    labels2 = (jax.random.uniform(k4, (B2, C2)) > 0.7).astype(jnp.float32)
    out2 = jax.block_until_ready(combine_loss(logits2, labels2))
    ref2 = _reference(logits2, labels2)
    assert out2.shape == (B2, C2)
    assert jnp.allclose(out2, ref2, atol=1e-5, rtol=1e-5), "mismatch (unaligned)"

    print("KERNEL_OK")
</pallas_src>

<mosaic_0001>
module attributes {stable_mosaic.version = 11 : i64} {
  func.func @_fbeta_rows_kernel(%arg0: i32, %arg1: memref<4x32xf32, #tpu.memory_space<vmem>>, %arg2: memref<4x32xf32, #tpu.memory_space<vmem>>, %arg3: memref<4x1xf32, #tpu.memory_space<vmem>>) attributes {dimension_semantics = [#tpu.dimension_semantics<parallel>], iteration_bounds = array<i64: 1>, scalar_prefetch = 0 : i64, scratch_operands = 0 : i64, tpu.core_type = #tpu.core_type<tc>, window_params = [{transform_indices = @transform_0, window_bounds = array<i64: 4, 32>}, {transform_indices = @transform_1, window_bounds = array<i64: 4, 32>}, {transform_indices = @transform_2, window_bounds = array<i64: 4, 1>}]} {
    %c0 = arith.constant 0 : index
    %c0_0 = arith.constant 0 : index
    %0 = vector.load %arg1[%c0, %c0_0] : memref<4x32xf32, #tpu.memory_space<vmem>>, vector<4x32xf32>
    %c0_1 = arith.constant 0 : index
    %c0_2 = arith.constant 0 : index
    %1 = vector.load %arg2[%c0_1, %c0_2] : memref<4x32xf32, #tpu.memory_space<vmem>>, vector<4x32xf32>
    %2 = arith.negf %0 : vector<4x32xf32>
    %3 = math.exp %2 : vector<4x32xf32>
    %cst = arith.constant 1.000000e+00 : f32
    %4 = vector.broadcast %cst : f32 to vector<4x32xf32>
    %5 = arith.addf %4, %3 : vector<4x32xf32>
    %6 = arith.divf %4, %5 : vector<4x32xf32>
    %cst_3 = arith.constant dense<0.000000e+00> : vector<4xf32>
    %7 = vector.multi_reduction <add>, %6, %cst_3 [1] : vector<4x32xf32> to vector<4xf32>
    %8 = vector.shape_cast %7 : vector<4xf32> to vector<4x1xf32>
    %cst_4 = arith.constant 9.99999997E-7 : f32
    %9 = vector.broadcast %cst_4 : f32 to vector<4x1xf32>
    %10 = arith.addf %8, %9 : vector<4x1xf32>
    %cst_5 = arith.constant dense<0.000000e+00> : vector<4xf32>
    %11 = vector.multi_reduction <add>, %1, %cst_5 [1] : vector<4x32xf32> to vector<4xf32>
    %12 = vector.shape_cast %11 : vector<4xf32> to vector<4x1xf32>
    %cst_6 = arith.constant 9.99999997E-7 : f32
    %13 = vector.broadcast %cst_6 : f32 to vector<4x1xf32>
    %14 = arith.addf %12, %13 : vector<4x1xf32>
    %15 = arith.mulf %1, %6 : vector<4x32xf32>
    %cst_7 = arith.constant dense<0.000000e+00> : vector<4xf32>
    %16 = vector.multi_reduction <add>, %15, %cst_7 [1] : vector<4x32xf32> to vector<4xf32>
    %17 = vector.shape_cast %16 : vector<4xf32> to vector<4x1xf32>
    %18 = arith.divf %17, %10 : vector<4x1xf32>
    %19 = arith.divf %17, %14 : vector<4x1xf32>
    %cst_8 = arith.constant 5.000000e+00 : f32
    %20 = vector.broadcast %cst_8 : f32 to vector<4x1xf32>
    %21 = arith.mulf %20, %18 : vector<4x1xf32>
    %22 = arith.mulf %21, %19 : vector<4x1xf32>
    %cst_9 = arith.constant 4.000000e+00 : f32
    %23 = vector.broadcast %cst_9 : f32 to vector<4x1xf32>
    %24 = arith.mulf %23, %18 : vector<4x1xf32>
    %25 = arith.addf %24, %19 : vector<4x1xf32>
    %cst_10 = arith.constant 9.99999997E-7 : f32
    %26 = vector.broadcast %cst_10 : f32 to vector<4x1xf32>
    %27 = arith.addf %25, %26 : vector<4x1xf32>
    %28 = arith.divf %22, %27 : vector<4x1xf32>
    %c0_11 = arith.constant 0 : index
    %c0_12 = arith.constant 0 : index
    %29 = vector.load %arg3[%c0_11, %c0_12] : memref<4x1xf32, #tpu.memory_space<vmem>>, vector<4x1xf32>
    tpu.vector_store %arg3[%c0_11, %c0_12], %28 {strides = array<i32>} : memref<4x1xf32, #tpu.memory_space<vmem>>, vector<4x1xf32>,
    return
  }
  func.func @transform_0(%arg0: i32) -> (i32, i32) {
    %c0_i32 = arith.constant 0 : i32
    %c0_i32_0 = arith.constant 0 : i32
    return %arg0, %c0_i32 : i32, i32
  }
  func.func @transform_1(%arg0: i32) -> (i32, i32) {
    %c0_i32 = arith.constant 0 : i32
    %c0_i32_0 = arith.constant 0 : i32
    return %arg0, %c0_i32 : i32, i32
  }
  func.func @transform_2(%arg0: i32) -> (i32, i32) {
    %c0_i32 = arith.constant 0 : i32
    %c0_i32_0 = arith.constant 0 : i32
    return %arg0, %c0_i32 : i32, i32
  }
}

</mosaic_0001>

<llo_original>
// kernel: tpu_custom_call.1
$region0: #{tpu_custom_call.1}
  #allocation0 [shape = 'u32[]', space=smem, size = 0x4, offset = 0x4, fixed_abs, tag = 'smem constant byte address 0x4 - core index']
  #allocation1 [shape = 'u32[72,128]{1,0:T(1,128)}', space=vmem, size = 0x9000, scoped, tag = 'internal scratch']
  %s0 = inlined_call_operand.hbm [shape: f32[4,32], index: 0, kind: input, shape index: {}]
  %s1 = inlined_call_operand.hbm [shape: f32[4,32], index: 1, kind: input, shape index: {}]
  %s2 = inlined_call_operand.vmem [shape: f32[4,1], index: 2, kind: output, shape index: {}]
  %s3 = sld [smem:[#allocation0]]
  $region26: #{tpu_custom_call.1} parent=0
    _
  %s5 = ssub.s32 1, %s3
  %s6 = scalar_select 0, %s5, %s3
  $region1: #{tpu_custom_call.1} parent=0
    #allocation2 [shape = 'u8[2048]{0}', space=vmem, size = 0x800, scoped, tag = 'input window, operand 0, single buffered']
    #allocation3 [shape = 's32[1]{0}', space=sflag, size = 0x4, scoped, tag = 'scoped memory for tpu_custom_call.1']
    #allocation4 [shape = 'u8[2048]{0}', space=vmem, size = 0x800, scoped, tag = 'input window, operand 1, single buffered']
    #allocation5 [shape = 's32[1]{0}', space=sflag, size = 0x4, scoped, tag = 'scoped memory for tpu_custom_call.1']
    %7 = vsyncpa [#allocation3], 0
    %8 = vsyncpa [#allocation5], 0
    // Predicated region
    $region2: #{tpu_custom_call.1} parent=1 // pred_check
      _
    $region3: #{tpu_custom_call.1} parent=1 // pred_check_branch
      %10 = sbr.rel (0) target = $region5
    $region4: #{tpu_custom_call.1} parent=1 // pred_region
      %12 = vsyncadd [#allocation3], 0
      %s14 = sshll.u32 %s0, 4
      %s15 = int_to_ptr.hbm [resolvable:$true] %s14
      %s16 = sshll.u32 [#allocation2], 4
      %s17 = int_to_ptr.vmem [resolvable:$true] %s16
      %19 = dma.hbm_to_vmem [thread:$0]  %s15, 64, %s17, [#allocation3]
    $region5: #{tpu_custom_call.1} parent=1 // pred_fallthru
      _
    // Predicated region
    $region6: #{tpu_custom_call.1} parent=1 // pred_check
      _
    $region7: #{tpu_custom_call.1} parent=1 // pred_check_branch
      %21 = sbr.rel (0) target = $region9
    $region8: #{tpu_custom_call.1} parent=1 // pred_region
      %23 = vsyncadd [#allocation5], 0
      %s25 = sshll.u32 %s1, 4
      %s26 = int_to_ptr.hbm [resolvable:$true] %s25
      %s27 = sshll.u32 [#allocation4], 4
      %s28 = int_to_ptr.vmem [resolvable:$true] %s27
      %30 = dma.hbm_to_vmem [thread:$0]  %s26, 64, %s28, [#allocation5]
    $region9: #{tpu_custom_call.1} parent=1 // pred_fallthru
      _
    // Predicated region
    $region10: #{tpu_custom_call.1} parent=1 // pred_check
      _
    $region11: #{tpu_custom_call.1} parent=1 // pred_check_branch
      %32 = sbr.rel (0) target = $region13
    $region12: #{tpu_custom_call.1} parent=1 // pred_region
      %34 = dma.done [#allocation3], 64
    $region13: #{tpu_custom_call.1} parent=1 // pred_fallthru
      _
    // Predicated region
    $region14: #{tpu_custom_call.1} parent=1 // pred_check
      _
    $region15: #{tpu_custom_call.1} parent=1 // pred_check_branch
      %36 = sbr.rel (0) target = $region17
    $region16: #{tpu_custom_call.1} parent=1 // pred_region
      %38 = dma.done [#allocation5], 64
    $region17: #{tpu_custom_call.1} parent=1 // pred_fallthru
      _
    %v39 = vld [vmem:[#allocation2] sm:$0xf]
    %v40 = vld [vmem:[#allocation4] sm:$0xf]
    %v41 = vxor.u32 %v39, 2147483648
    %v42 = vmul.f32 %v41, 1.442695
    %v43 = vpow.pop %v42
    %v44 = vadd.f32 %v43, 1.0
    %v45 = vrcp.pop %v44
    %v46 = vmul.f32 %v44, %v45
    %v47 = vsub.f32 1.0, %v46
    %v48 = vmul.f32 %v45, %v47
    %v49 = vadd.f32 %v45, %v48
    %vm50 = vweird.f32 %v44
    %vm51 = vweird.f32 %v45
    %vm52 = vmor %vm50, %vm51
    %v53 = vsel %vm52, %v45, %v49
    %v54 = vand.u32 2147483647, %v44
    %vm55 = vcmp.eq.f32.partialorder %v54, 8.507059e+37
    %v56 = vand.u32 %v44, 2147483648
    %v57 = vor.u32 1.1754944e-38, %v56
    %v58 = vsel %vm55, %v57, %v53
    %v59 = vmul.f32 1.0, %v58
    %vm60 = vcmask 257024
    %v61 = vsel %vm60, %v59, 0.0
    %62 = vadd.xlane.f32.xlu0 %v61
    %v63 = vpop.xlane.xlu0 %62
    %v64 = vadd.f32 %v63, 1e-06
    %v65 = vsel %vm60, %v40, 0.0
    %66 = vadd.xlane.f32.xlu0 %v65
    %v67 = vpop.xlane.xlu0 %66
    %v68 = vadd.f32 %v67, 1e-06
    %v69 = vmul.f32 %v40, %v59
    %v70 = vsel %vm60, %v69, 0.0
    %71 = vadd.xlane.f32.xlu0 %v70
    %v72 = vpop.xlane.xlu0 %71
    %v73 = vrcp.pop %v64
    %v74 = vmul.f32 %v64, %v73
    %v75 = vsub.f32 1.0, %v74
    %v76 = vmul.f32 %v73, %v75
    %v77 = vadd.f32 %v73, %v76
    %vm78 = vweird.f32 %v64
    %vm79 = vweird.f32 %v73
    %vm80 = vmor %vm78, %vm79
    %v81 = vsel %vm80, %v73, %v77
    %v82 = vand.u32 2147483647, %v64
    %vm83 = vcmp.eq.f32.partialorder %v82, 8.507059e+37
    %v84 = vand.u32 %v64, 2147483648
    %v85 = vor.u32 1.1754944e-38, %v84
    %v86 = vsel %vm83, %v85, %v81
    %v87 = vmul.f32 %v72, %v86
    %v88 = vrcp.pop %v68
    %v89 = vmul.f32 %v68, %v88
    %v90 = vsub.f32 1.0, %v89
    %v91 = vmul.f32 %v88, %v90
    %v92 = vadd.f32 %v88, %v91
    %vm93 = vweird.f32 %v68
    %vm94 = vweird.f32 %v88
    %vm95 = vmor %vm93, %vm94
    %v96 = vsel %vm95, %v88, %v92
    %v97 = vand.u32 2147483647, %v68
    %vm98 = vcmp.eq.f32.partialorder %v97, 8.507059e+37
    %v99 = vand.u32 %v68, 2147483648
    %v100 = vor.u32 1.1754944e-38, %v99
    %v101 = vsel %vm98, %v100, %v96
    %v102 = vmul.f32 %v72, %v101
    %v103 = vmul.f32 %v87, 5.0
    %v104 = vmul.f32 %v103, %v102
    %v105 = vmul.f32 %v87, 4.0
    %v106 = vadd.f32 %v105, %v102
    %v107 = vadd.f32 %v106, 1e-06
    %v108 = vrcp.pop %v107
    %v109 = vmul.f32 %v107, %v108
    %v110 = vsub.f32 1.0, %v109
    %v111 = vmul.f32 %v108, %v110
    %v112 = vadd.f32 %v108, %v111
    %vm113 = vweird.f32 %v107
    %vm114 = vweird.f32 %v108
    %vm115 = vmor %vm113, %vm114
    %v116 = vsel %vm115, %v108, %v112
    %v117 = vand.u32 2147483647, %v107
    %vm118 = vcmp.eq.f32.partialorder %v117, 8.507059e+37
    %v119 = vand.u32 %v107, 2147483648
    %v120 = vor.u32 1.1754944e-38, %v119
    %v121 = vsel %vm118, %v120, %v116
    %v122 = vmul.f32 %v104, %v121
    %vm123 = vcmask 3072
    %124 = vst.msk [vmem:[%s2] sm:$0xf] %vm123, %v122
    // Predicated region
    $region18: #{tpu_custom_call.1} parent=1 // pred_check
      _
    $region19: #{tpu_custom_call.1} parent=1 // pred_check_branch
      %126 = sbr.rel (0) target = $region21
    $region20: #{tpu_custom_call.1} parent=1 // pred_region
      _
    $region21: #{tpu_custom_call.1} parent=1 // pred_fallthru
      _
    // Predicated region
    $region22: #{tpu_custom_call.1} parent=1 // pred_check
      _
    $region23: #{tpu_custom_call.1} parent=1 // pred_check_branch
      %128 = sbr.rel (0) target = $region25
    $region24: #{tpu_custom_call.1} parent=1 // pred_region
      _
    $region25: #{tpu_custom_call.1} parent=1 // pred_fallthru
      _
    %129 = vsyncpa [#allocation3], 1
    %130 = vsyncpa [#allocation5], 1

</llo_original>
